<compile_context>
chip_gen: v5e
topology: v5e:2x2
jax: 0.10.0
libtpu: 0.0.40
codegen_flags: <defaults>
</compile_context>

<pallas_src>
import functools

import jax
import jax.numpy as jnp
from jax import lax
from jax.experimental import pallas as pl
from jax.experimental.pallas import tpu as pltpu


# Contract the last axis of both operands: (M, K) x (N, K) -> (M, N).
_CONTRACT_LAST = (((1,), (1,)), ((), ()))


# ----------------------------------------------------------------------------
# Pallas kernel: one batch element of fused cross-attention (all heads inside)
# ----------------------------------------------------------------------------
def _cross_attention_kernel(q_ref, kv_ref, wq_ref, wkv_ref, wo_ref, bo_ref,
                            o_ref, *, num_heads, head_dim):
    C = num_heads * head_dim

    q_tok = q_ref[0]            # (Nq,  C)  bf16
    kv_tok = kv_ref[0]          # (Nkv, C)  bf16

    # Full-width projections: C-deep MXU contractions, f32 accumulation.
    # (scale = head_dim**-0.5 is already folded into Wq)
    q = jnp.dot(q_tok, wq_ref[...],
                preferred_element_type=jnp.float32)       # (Nq,  C)  f32
    kv = jnp.dot(kv_tok, wkv_ref[...],
                 preferred_element_type=jnp.float32)      # (Nkv, 2C) f32

    # Cast full-width activations to bf16 ONCE (not per head).
    q_bf = q.astype(jnp.bfloat16)                         # (Nq,  C)
    k_bf = kv[:, :C].astype(jnp.bfloat16)                 # (Nkv, C)
    v_bf = kv[:, C:].astype(jnp.bfloat16)                 # (Nkv, C)

    # Per-head attention, statically unrolled (LLO sees the whole schedule).
    ctx_heads = []
    for h in range(num_heads):
        lo = h * head_dim
        hi = lo + head_dim
        s = lax.dot_general(q_bf[:, lo:hi], k_bf[:, lo:hi], _CONTRACT_LAST,
                            preferred_element_type=jnp.float32)   # (Nq, Nkv)
        m = jnp.max(s, axis=-1, keepdims=True)
        e = jnp.exp(s - m)
        denom = jnp.sum(e, axis=-1, keepdims=True)
        p = (e * pl.reciprocal(denom, approx=True)).astype(jnp.bfloat16)
        ctx_heads.append(jnp.dot(p, v_bf[:, lo:hi],
                                 preferred_element_type=jnp.float32))  # (Nq, Dh)

    # Re-assemble (Nq, C) context and do ONE C-deep output projection.
    ctx = jnp.concatenate(ctx_heads, axis=-1).astype(jnp.bfloat16)     # (Nq, C)
    out = jnp.dot(ctx, wo_ref[...], preferred_element_type=jnp.float32)
    o_ref[0] = (out + bo_ref[...]).astype(o_ref.dtype)


# ----------------------------------------------------------------------------
# Wrapper
# ----------------------------------------------------------------------------
@functools.partial(jax.jit, static_argnames=("num_heads",))
def cross_attention_forward(query, image_token, params, *, num_heads):
    """query: (B, Nq, C), image_token: (B, Nkv, C) -> (B, Nq, C) float32."""
    B, Nq, C = query.shape
    _, Nkv, _ = image_token.shape
    assert C % num_heads == 0
    H = num_heads
    Dh = C // H

    # bf16 MXU feeds (halves activation DMA bytes); f32 accumulation in-kernel.
    q_bf = query.astype(jnp.bfloat16)
    kv_bf = image_token.astype(jnp.bfloat16)

    flops = 2 * B * (Nq * C * C            # q projection
                     + 2 * Nkv * C * C     # fused kv projection
                     + 2 * Nq * Nkv * C    # qk^T and attn@v (summed over heads)
                     + Nq * C * C)         # output projection
    transcendentals = B * H * Nq * (Nkv + 1)          # exp + approx reciprocal
    bytes_accessed = (B * (Nq + Nkv) * C * 2          # bf16 activations
                      + 4 * C * C * 2                 # bf16 weights (resident)
                      + C * 4                         # f32 bias
                      + B * Nq * C * 4)               # f32 output

    kernel = functools.partial(_cross_attention_kernel,
                               num_heads=H, head_dim=Dh)

    grid_spec = pltpu.PrefetchScalarGridSpec(
        num_scalar_prefetch=0,
        grid=(B,),                                              # batch only
        in_specs=[
            pl.BlockSpec((1, Nq, C), lambda b: (b, 0, 0)),      # query tokens
            pl.BlockSpec((1, Nkv, C), lambda b: (b, 0, 0)),     # image tokens
            pl.BlockSpec((C, C), lambda b: (0, 0)),             # Wq (scaled)
            pl.BlockSpec((C, 2 * C), lambda b: (0, 0)),         # Wkv (fused)
            pl.BlockSpec((C, C), lambda b: (0, 0)),             # Wproj
            pl.BlockSpec((1, C), lambda b: (0, 0)),             # proj bias
        ],
        out_specs=pl.BlockSpec((1, Nq, C), lambda b: (b, 0, 0)),
    )

    return pl.pallas_call(
        kernel,
        out_shape=jax.ShapeDtypeStruct((B, Nq, C), jnp.float32),
        grid_spec=grid_spec,
        compiler_params=pltpu.CompilerParams(
            dimension_semantics=("parallel",)),
        cost_estimate=pl.CostEstimate(flops=int(flops),
                                      transcendentals=int(transcendentals),
                                      bytes_accessed=int(bytes_accessed)),
    )(q_bf, kv_bf, params["wq_scaled"], params["wkv_bf"],
      params["wp_bf"], params["proj_b2d"])


# ----------------------------------------------------------------------------
# Parameters (canonical f32 weights + bf16 kernel copies built ONCE)
# ----------------------------------------------------------------------------
def init_params(key, dim, num_heads):
    assert dim % num_heads == 0
    C = dim
    Dh = C // num_heads
    scale = Dh ** (-0.5)
    kq, kkv, kp, kb = jax.random.split(key, 4)
    std = 1.0 / jnp.sqrt(jnp.float32(C))

    # Canonical weights in matmul layout (in, out); qkv_bias=False (module default).
    wq = std * jax.random.normal(kq, (C, C), jnp.float32)
    wkv = std * jax.random.normal(kkv, (C, 2 * C), jnp.float32)
    wp = std * jax.random.normal(kp, (C, C), jnp.float32)
    bp = 0.05 * jax.random.normal(kb, (C,), jnp.float32)

    return {
        "wq": wq, "wkv": wkv, "wp": wp, "bp": bp,          # f32, for the reference
        # Scale folded into Wq in f32, cast to bf16 LAST (do not re-apply scale).
        "wq_scaled": (wq * scale).astype(jnp.bfloat16),    # (C, C)
        "wkv_bf": wkv.astype(jnp.bfloat16),                # (C, 2C)
        "wp_bf": wp.astype(jnp.bfloat16),                  # (C, C)
        "proj_b2d": bp.reshape(1, C),                      # f32 epilogue
    }


# ----------------------------------------------------------------------------
# Pure-JAX reference mirroring the PyTorch forward (dropout p=0 -> identity)
# ----------------------------------------------------------------------------
def cross_attention_reference(query, image_token, params, num_heads):
    B, Nq, C = query.shape
    _, Nkv, _ = image_token.shape
    Dh = C // num_heads
    scale = Dh ** (-0.5)
    q = query @ params["wq"]
    kv = image_token @ params["wkv"]
    k, v = kv[..., :C], kv[..., C:]
    q = q.reshape(B, Nq, num_heads, Dh).transpose(0, 2, 1, 3)
    k = k.reshape(B, Nkv, num_heads, Dh).transpose(0, 2, 1, 3)
    v = v.reshape(B, Nkv, num_heads, Dh).transpose(0, 2, 1, 3)
    attn = jax.nn.softmax(jnp.einsum("bhqd,bhkd->bhqk", q, k) * scale, axis=-1)
    x = jnp.einsum("bhqk,bhkd->bhqd", attn, v)
    x = x.transpose(0, 2, 1, 3).reshape(B, Nq, C)
    return x @ params["wp"] + params["bp"]


if __name__ == "__main__":
    # Small shapes consistent with the module: dim=128, 8 heads (head_dim=16),
    # 8 query tokens attending over 16 image tokens, batch 2.
    B, Nq, Nkv = 2, 8, 16
    dim, num_heads = 128, 8

    key = jax.random.PRNGKey(0)
    k_param, k_q, k_img = jax.random.split(key, 3)
    params = init_params(k_param, dim, num_heads)
    query = jax.random.normal(k_q, (B, Nq, dim), jnp.float32)
    image_token = jax.random.normal(k_img, (B, Nkv, dim), jnp.float32)

    out = cross_attention_forward(query, image_token, params,
                                  num_heads=num_heads)
    out = jax.block_until_ready(out)

    ref = cross_attention_reference(query, image_token, params, num_heads)

    assert out.shape == (B, Nq, dim), out.shape
    assert bool(jnp.all(jnp.isfinite(out)))
    max_err = float(jnp.max(jnp.abs(out - ref)))
    assert max_err < 5e-2, f"max abs err vs f32 reference: {max_err}"
    print("KERNEL_OK")
</pallas_src>

<mosaic_0001>
module attributes {stable_mosaic.version = 11 : i64} {
  func.func @_cross_attention_kernel(%arg0: i32, %arg1: memref<1x8x128xbf16, #tpu.memory_space<vmem>>, %arg2: memref<1x16x128xbf16, #tpu.memory_space<vmem>>, %arg3: memref<128x128xbf16, #tpu.memory_space<vmem>>, %arg4: memref<128x256xbf16, #tpu.memory_space<vmem>>, %arg5: memref<128x128xbf16, #tpu.memory_space<vmem>>, %arg6: memref<1x128xf32, #tpu.memory_space<vmem>>, %arg7: memref<1x8x128xf32, #tpu.memory_space<vmem>>) attributes {dimension_semantics = [#tpu.dimension_semantics<parallel>], iteration_bounds = array<i64: 2>, scalar_prefetch = 0 : i64, scratch_operands = 0 : i64, tpu.core_type = #tpu.core_type<tc>, window_params = [{transform_indices = @transform_0, window_bounds = array<i64: 1, 8, 128>}, {transform_indices = @transform_1, window_bounds = array<i64: 1, 16, 128>}, {pipeline_mode = #tpu.pipeline_mode<synchronous>, transform_indices = @transform_2, window_bounds = array<i64: 128, 128>}, {pipeline_mode = #tpu.pipeline_mode<synchronous>, transform_indices = @transform_3, window_bounds = array<i64: 128, 256>}, {pipeline_mode = #tpu.pipeline_mode<synchronous>, transform_indices = @transform_4, window_bounds = array<i64: 128, 128>}, {pipeline_mode = #tpu.pipeline_mode<synchronous>, transform_indices = @transform_5, window_bounds = array<i64: 1, 128>}, {transform_indices = @transform_6, window_bounds = array<i64: 1, 8, 128>}]} {
    %c0 = arith.constant 0 : index
    %c0_0 = arith.constant 0 : index
    %c0_1 = arith.constant 0 : index
    %0 = vector.load %arg1[%c0, %c0_0, %c0_1] : memref<1x8x128xbf16, #tpu.memory_space<vmem>>, vector<1x8x128xbf16>
    %1 = vector.shape_cast %0 : vector<1x8x128xbf16> to vector<8x128xbf16>
    %c0_2 = arith.constant 0 : index
    %c0_3 = arith.constant 0 : index
    %c0_4 = arith.constant 0 : index
    %2 = vector.load %arg2[%c0_2, %c0_3, %c0_4] : memref<1x16x128xbf16, #tpu.memory_space<vmem>>, vector<1x16x128xbf16>
    %3 = vector.shape_cast %2 : vector<1x16x128xbf16> to vector<16x128xbf16>
    %c0_5 = arith.constant 0 : index
    %c0_6 = arith.constant 0 : index
    %4 = vector.load %arg3[%c0_5, %c0_6] : memref<128x128xbf16, #tpu.memory_space<vmem>>, vector<128x128xbf16>
    %cst = arith.constant dense<0.000000e+00> : vector<8x128xf32>
    %5 = tpu.matmul %1, %4, %cst {dimension_numbers = #tpu.dot_dimension_numbers<[1], [0], [0], [1], [0, 0, 1, 1], [], []>} : vector<8x128xbf16>, vector<128x128xbf16>, vector<8x128xf32> -> vector<8x128xf32>
    %c0_7 = arith.constant 0 : index
    %c0_8 = arith.constant 0 : index
    %6 = vector.load %arg4[%c0_7, %c0_8] : memref<128x256xbf16, #tpu.memory_space<vmem>>, vector<128x256xbf16>
    %cst_9 = arith.constant dense<0.000000e+00> : vector<16x256xf32>
    %7 = tpu.matmul %3, %6, %cst_9 {dimension_numbers = #tpu.dot_dimension_numbers<[1], [0], [0], [1], [0, 0, 1, 1], [], []>} : vector<16x128xbf16>, vector<128x256xbf16>, vector<16x256xf32> -> vector<16x256xf32>
    %8 = arith.truncf %5 : vector<8x128xf32> to vector<8x128xbf16>
    %9 = vector.extract_strided_slice %7 {offsets = [0, 0], sizes = [16, 128], strides = [1, 1]} : vector<16x256xf32> to vector<16x128xf32>
    %10 = arith.truncf %9 : vector<16x128xf32> to vector<16x128xbf16>
    %11 = vector.extract_strided_slice %7 {offsets = [0, 128], sizes = [16, 128], strides = [1, 1]} : vector<16x256xf32> to vector<16x128xf32>
    %12 = arith.truncf %11 : vector<16x128xf32> to vector<16x128xbf16>
    %13 = vector.extract_strided_slice %8 {offsets = [0, 0], sizes = [8, 16], strides = [1, 1]} : vector<8x128xbf16> to vector<8x16xbf16>
    %14 = vector.extract_strided_slice %10 {offsets = [0, 0], sizes = [16, 16], strides = [1, 1]} : vector<16x128xbf16> to vector<16x16xbf16>
    %cst_10 = arith.constant dense<0.000000e+00> : vector<8x16xf32>
    %15 = tpu.matmul %13, %14, %cst_10 {dimension_numbers = #tpu.dot_dimension_numbers<[1], [1], [0], [0], [0, 0, 1, 0], [], []>} : vector<8x16xbf16>, vector<16x16xbf16>, vector<8x16xf32> -> vector<8x16xf32>
    %cst_11 = arith.constant dense<0xFF800000> : vector<8xf32>
    %16 = vector.multi_reduction <maximumf>, %15, %cst_11 [1] : vector<8x16xf32> to vector<8xf32>
    %17 = vector.shape_cast %16 : vector<8xf32> to vector<8x1xf32>
    %18 = vector.broadcast %17 : vector<8x1xf32> to vector<8x16xf32>
    %19 = arith.subf %15, %18 : vector<8x16xf32>
    %20 = math.exp %19 : vector<8x16xf32>
    %cst_12 = arith.constant dense<0.000000e+00> : vector<8xf32>
    %21 = vector.multi_reduction <add>, %20, %cst_12 [1] : vector<8x16xf32> to vector<8xf32>
    %22 = vector.shape_cast %21 : vector<8xf32> to vector<8x1xf32>
    %23 = tpu.reciprocal %22 {approx = true} : vector<8x1xf32> -> vector<8x1xf32>
    %24 = vector.broadcast %23 : vector<8x1xf32> to vector<8x16xf32>
    %25 = arith.mulf %20, %24 : vector<8x16xf32>
    %26 = arith.truncf %25 : vector<8x16xf32> to vector<8x16xbf16>
    %27 = vector.extract_strided_slice %12 {offsets = [0, 0], sizes = [16, 16], strides = [1, 1]} : vector<16x128xbf16> to vector<16x16xbf16>
    %cst_13 = arith.constant dense<0.000000e+00> : vector<8x16xf32>
    %28 = tpu.matmul %26, %27, %cst_13 {dimension_numbers = #tpu.dot_dimension_numbers<[1], [0], [0], [1], [0, 0, 1, 1], [], []>} : vector<8x16xbf16>, vector<16x16xbf16>, vector<8x16xf32> -> vector<8x16xf32>
    %29 = vector.extract_strided_slice %8 {offsets = [0, 16], sizes = [8, 16], strides = [1, 1]} : vector<8x128xbf16> to vector<8x16xbf16>
    %30 = vector.extract_strided_slice %10 {offsets = [0, 16], sizes = [16, 16], strides = [1, 1]} : vector<16x128xbf16> to vector<16x16xbf16>
    %cst_14 = arith.constant dense<0.000000e+00> : vector<8x16xf32>
    %31 = tpu.matmul %29, %30, %cst_14 {dimension_numbers = #tpu.dot_dimension_numbers<[1], [1], [0], [0], [0, 0, 1, 0], [], []>} : vector<8x16xbf16>, vector<16x16xbf16>, vector<8x16xf32> -> vector<8x16xf32>
    %cst_15 = arith.constant dense<0xFF800000> : vector<8xf32>
    %32 = vector.multi_reduction <maximumf>, %31, %cst_15 [1] : vector<8x16xf32> to vector<8xf32>
    %33 = vector.shape_cast %32 : vector<8xf32> to vector<8x1xf32>
    %34 = vector.broadcast %33 : vector<8x1xf32> to vector<8x16xf32>
    %35 = arith.subf %31, %34 : vector<8x16xf32>
    %36 = math.exp %35 : vector<8x16xf32>
    %cst_16 = arith.constant dense<0.000000e+00> : vector<8xf32>
    %37 = vector.multi_reduction <add>, %36, %cst_16 [1] : vector<8x16xf32> to vector<8xf32>
    %38 = vector.shape_cast %37 : vector<8xf32> to vector<8x1xf32>
    %39 = tpu.reciprocal %38 {approx = true} : vector<8x1xf32> -> vector<8x1xf32>
    %40 = vector.broadcast %39 : vector<8x1xf32> to vector<8x16xf32>
    %41 = arith.mulf %36, %40 : vector<8x16xf32>
    %42 = arith.truncf %41 : vector<8x16xf32> to vector<8x16xbf16>
    %43 = vector.extract_strided_slice %12 {offsets = [0, 16], sizes = [16, 16], strides = [1, 1]} : vector<16x128xbf16> to vector<16x16xbf16>
    %cst_17 = arith.constant dense<0.000000e+00> : vector<8x16xf32>
    %44 = tpu.matmul %42, %43, %cst_17 {dimension_numbers = #tpu.dot_dimension_numbers<[1], [0], [0], [1], [0, 0, 1, 1], [], []>} : vector<8x16xbf16>, vector<16x16xbf16>, vector<8x16xf32> -> vector<8x16xf32>
    %45 = vector.extract_strided_slice %8 {offsets = [0, 32], sizes = [8, 16], strides = [1, 1]} : vector<8x128xbf16> to vector<8x16xbf16>
    %46 = vector.extract_strided_slice %10 {offsets = [0, 32], sizes = [16, 16], strides = [1, 1]} : vector<16x128xbf16> to vector<16x16xbf16>
    %cst_18 = arith.constant dense<0.000000e+00> : vector<8x16xf32>
    %47 = tpu.matmul %45, %46, %cst_18 {dimension_numbers = #tpu.dot_dimension_numbers<[1], [1], [0], [0], [0, 0, 1, 0], [], []>} : vector<8x16xbf16>, vector<16x16xbf16>, vector<8x16xf32> -> vector<8x16xf32>
    %cst_19 = arith.constant dense<0xFF800000> : vector<8xf32>
    %48 = vector.multi_reduction <maximumf>, %47, %cst_19 [1] : vector<8x16xf32> to vector<8xf32>
    %49 = vector.shape_cast %48 : vector<8xf32> to vector<8x1xf32>
    %50 = vector.broadcast %49 : vector<8x1xf32> to vector<8x16xf32>
    %51 = arith.subf %47, %50 : vector<8x16xf32>
    %52 = math.exp %51 : vector<8x16xf32>
    %cst_20 = arith.constant dense<0.000000e+00> : vector<8xf32>
    %53 = vector.multi_reduction <add>, %52, %cst_20 [1] : vector<8x16xf32> to vector<8xf32>
    %54 = vector.shape_cast %53 : vector<8xf32> to vector<8x1xf32>
    %55 = tpu.reciprocal %54 {approx = true} : vector<8x1xf32> -> vector<8x1xf32>
    %56 = vector.broadcast %55 : vector<8x1xf32> to vector<8x16xf32>
    %57 = arith.mulf %52, %56 : vector<8x16xf32>
    %58 = arith.truncf %57 : vector<8x16xf32> to vector<8x16xbf16>
    %59 = vector.extract_strided_slice %12 {offsets = [0, 32], sizes = [16, 16], strides = [1, 1]} : vector<16x128xbf16> to vector<16x16xbf16>
    %cst_21 = arith.constant dense<0.000000e+00> : vector<8x16xf32>
    %60 = tpu.matmul %58, %59, %cst_21 {dimension_numbers = #tpu.dot_dimension_numbers<[1], [0], [0], [1], [0, 0, 1, 1], [], []>} : vector<8x16xbf16>, vector<16x16xbf16>, vector<8x16xf32> -> vector<8x16xf32>
    %61 = vector.extract_strided_slice %8 {offsets = [0, 48], sizes = [8, 16], strides = [1, 1]} : vector<8x128xbf16> to vector<8x16xbf16>
    %62 = vector.extract_strided_slice %10 {offsets = [0, 48], sizes = [16, 16], strides = [1, 1]} : vector<16x128xbf16> to vector<16x16xbf16>
    %cst_22 = arith.constant dense<0.000000e+00> : vector<8x16xf32>
    %63 = tpu.matmul %61, %62, %cst_22 {dimension_numbers = #tpu.dot_dimension_numbers<[1], [1], [0], [0], [0, 0, 1, 0], [], []>} : vector<8x16xbf16>, vector<16x16xbf16>, vector<8x16xf32> -> vector<8x16xf32>
    %cst_23 = arith.constant dense<0xFF800000> : vector<8xf32>
    %64 = vector.multi_reduction <maximumf>, %63, %cst_23 [1] : vector<8x16xf32> to vector<8xf32>
    %65 = vector.shape_cast %64 : vector<8xf32> to vector<8x1xf32>
    %66 = vector.broadcast %65 : vector<8x1xf32> to vector<8x16xf32>
    %67 = arith.subf %63, %66 : vector<8x16xf32>
    %68 = math.exp %67 : vector<8x16xf32>
    %cst_24 = arith.constant dense<0.000000e+00> : vector<8xf32>
    %69 = vector.multi_reduction <add>, %68, %cst_24 [1] : vector<8x16xf32> to vector<8xf32>
    %70 = vector.shape_cast %69 : vector<8xf32> to vector<8x1xf32>
    %71 = tpu.reciprocal %70 {approx = true} : vector<8x1xf32> -> vector<8x1xf32>
    %72 = vector.broadcast %71 : vector<8x1xf32> to vector<8x16xf32>
    %73 = arith.mulf %68, %72 : vector<8x16xf32>
    %74 = arith.truncf %73 : vector<8x16xf32> to vector<8x16xbf16>
    %75 = vector.extract_strided_slice %12 {offsets = [0, 48], sizes = [16, 16], strides = [1, 1]} : vector<16x128xbf16> to vector<16x16xbf16>
    %cst_25 = arith.constant dense<0.000000e+00> : vector<8x16xf32>
    %76 = tpu.matmul %74, %75, %cst_25 {dimension_numbers = #tpu.dot_dimension_numbers<[1], [0], [0], [1], [0, 0, 1, 1], [], []>} : vector<8x16xbf16>, vector<16x16xbf16>, vector<8x16xf32> -> vector<8x16xf32>
    %77 = vector.extract_strided_slice %8 {offsets = [0, 64], sizes = [8, 16], strides = [1, 1]} : vector<8x128xbf16> to vector<8x16xbf16>
    %78 = vector.extract_strided_slice %10 {offsets = [0, 64], sizes = [16, 16], strides = [1, 1]} : vector<16x128xbf16> to vector<16x16xbf16>
    %cst_26 = arith.constant dense<0.000000e+00> : vector<8x16xf32>
    %79 = tpu.matmul %77, %78, %cst_26 {dimension_numbers = #tpu.dot_dimension_numbers<[1], [1], [0], [0], [0, 0, 1, 0], [], []>} : vector<8x16xbf16>, vector<16x16xbf16>, vector<8x16xf32> -> vector<8x16xf32>
    %cst_27 = arith.constant dense<0xFF800000> : vector<8xf32>
    %80 = vector.multi_reduction <maximumf>, %79, %cst_27 [1] : vector<8x16xf32> to vector<8xf32>
    %81 = vector.shape_cast %80 : vector<8xf32> to vector<8x1xf32>
    %82 = vector.broadcast %81 : vector<8x1xf32> to vector<8x16xf32>
    %83 = arith.subf %79, %82 : vector<8x16xf32>
    %84 = math.exp %83 : vector<8x16xf32>
    %cst_28 = arith.constant dense<0.000000e+00> : vector<8xf32>
    %85 = vector.multi_reduction <add>, %84, %cst_28 [1] : vector<8x16xf32> to vector<8xf32>
    %86 = vector.shape_cast %85 : vector<8xf32> to vector<8x1xf32>
    %87 = tpu.reciprocal %86 {approx = true} : vector<8x1xf32> -> vector<8x1xf32>
    %88 = vector.broadcast %87 : vector<8x1xf32> to vector<8x16xf32>
    %89 = arith.mulf %84, %88 : vector<8x16xf32>
    %90 = arith.truncf %89 : vector<8x16xf32> to vector<8x16xbf16>
    %91 = vector.extract_strided_slice %12 {offsets = [0, 64], sizes = [16, 16], strides = [1, 1]} : vector<16x128xbf16> to vector<16x16xbf16>
    %cst_29 = arith.constant dense<0.000000e+00> : vector<8x16xf32>
    %92 = tpu.matmul %90, %91, %cst_29 {dimension_numbers = #tpu.dot_dimension_numbers<[1], [0], [0], [1], [0, 0, 1, 1], [], []>} : vector<8x16xbf16>, vector<16x16xbf16>, vector<8x16xf32> -> vector<8x16xf32>
    %93 = vector.extract_strided_slice %8 {offsets = [0, 80], sizes = [8, 16], strides = [1, 1]} : vector<8x128xbf16> to vector<8x16xbf16>
    %94 = vector.extract_strided_slice %10 {offsets = [0, 80], sizes = [16, 16], strides = [1, 1]} : vector<16x128xbf16> to vector<16x16xbf16>
    %cst_30 = arith.constant dense<0.000000e+00> : vector<8x16xf32>
    %95 = tpu.matmul %93, %94, %cst_30 {dimension_numbers = #tpu.dot_dimension_numbers<[1], [1], [0], [0], [0, 0, 1, 0], [], []>} : vector<8x16xbf16>, vector<16x16xbf16>, vector<8x16xf32> -> vector<8x16xf32>
    %cst_31 = arith.constant dense<0xFF800000> : vector<8xf32>
    %96 = vector.multi_reduction <maximumf>, %95, %cst_31 [1] : vector<8x16xf32> to vector<8xf32>
    %97 = vector.shape_cast %96 : vector<8xf32> to vector<8x1xf32>
    %98 = vector.broadcast %97 : vector<8x1xf32> to vector<8x16xf32>
    %99 = arith.subf %95, %98 : vector<8x16xf32>
    %100 = math.exp %99 : vector<8x16xf32>
    %cst_32 = arith.constant dense<0.000000e+00> : vector<8xf32>
    %101 = vector.multi_reduction <add>, %100, %cst_32 [1] : vector<8x16xf32> to vector<8xf32>
    %102 = vector.shape_cast %101 : vector<8xf32> to vector<8x1xf32>
    %103 = tpu.reciprocal %102 {approx = true} : vector<8x1xf32> -> vector<8x1xf32>
    %104 = vector.broadcast %103 : vector<8x1xf32> to vector<8x16xf32>
    %105 = arith.mulf %100, %104 : vector<8x16xf32>
    %106 = arith.truncf %105 : vector<8x16xf32> to vector<8x16xbf16>
    %107 = vector.extract_strided_slice %12 {offsets = [0, 80], sizes = [16, 16], strides = [1, 1]} : vector<16x128xbf16> to vector<16x16xbf16>
    %cst_33 = arith.constant dense<0.000000e+00> : vector<8x16xf32>
    %108 = tpu.matmul %106, %107, %cst_33 {dimension_numbers = #tpu.dot_dimension_numbers<[1], [0], [0], [1], [0, 0, 1, 1], [], []>} : vector<8x16xbf16>, vector<16x16xbf16>, vector<8x16xf32> -> vector<8x16xf32>
    %109 = vector.extract_strided_slice %8 {offsets = [0, 96], sizes = [8, 16], strides = [1, 1]} : vector<8x128xbf16> to vector<8x16xbf16>
    %110 = vector.extract_strided_slice %10 {offsets = [0, 96], sizes = [16, 16], strides = [1, 1]} : vector<16x128xbf16> to vector<16x16xbf16>
    %cst_34 = arith.constant dense<0.000000e+00> : vector<8x16xf32>
    %111 = tpu.matmul %109, %110, %cst_34 {dimension_numbers = #tpu.dot_dimension_numbers<[1], [1], [0], [0], [0, 0, 1, 0], [], []>} : vector<8x16xbf16>, vector<16x16xbf16>, vector<8x16xf32> -> vector<8x16xf32>
    %cst_35 = arith.constant dense<0xFF800000> : vector<8xf32>
    %112 = vector.multi_reduction <maximumf>, %111, %cst_35 [1] : vector<8x16xf32> to vector<8xf32>
    %113 = vector.shape_cast %112 : vector<8xf32> to vector<8x1xf32>
    %114 = vector.broadcast %113 : vector<8x1xf32> to vector<8x16xf32>
    %115 = arith.subf %111, %114 : vector<8x16xf32>
    %116 = math.exp %115 : vector<8x16xf32>
    %cst_36 = arith.constant dense<0.000000e+00> : vector<8xf32>
    %117 = vector.multi_reduction <add>, %116, %cst_36 [1] : vector<8x16xf32> to vector<8xf32>
    %118 = vector.shape_cast %117 : vector<8xf32> to vector<8x1xf32>
    %119 = tpu.reciprocal %118 {approx = true} : vector<8x1xf32> -> vector<8x1xf32>
    %120 = vector.broadcast %119 : vector<8x1xf32> to vector<8x16xf32>
    %121 = arith.mulf %116, %120 : vector<8x16xf32>
    %122 = arith.truncf %121 : vector<8x16xf32> to vector<8x16xbf16>
    %123 = vector.extract_strided_slice %12 {offsets = [0, 96], sizes = [16, 16], strides = [1, 1]} : vector<16x128xbf16> to vector<16x16xbf16>
    %cst_37 = arith.constant dense<0.000000e+00> : vector<8x16xf32>
    %124 = tpu.matmul %122, %123, %cst_37 {dimension_numbers = #tpu.dot_dimension_numbers<[1], [0], [0], [1], [0, 0, 1, 1], [], []>} : vector<8x16xbf16>, vector<16x16xbf16>, vector<8x16xf32> -> vector<8x16xf32>
    %125 = vector.extract_strided_slice %8 {offsets = [0, 112], sizes = [8, 16], strides = [1, 1]} : vector<8x128xbf16> to vector<8x16xbf16>
    %126 = vector.extract_strided_slice %10 {offsets = [0, 112], sizes = [16, 16], strides = [1, 1]} : vector<16x128xbf16> to vector<16x16xbf16>
    %cst_38 = arith.constant dense<0.000000e+00> : vector<8x16xf32>
    %127 = tpu.matmul %125, %126, %cst_38 {dimension_numbers = #tpu.dot_dimension_numbers<[1], [1], [0], [0], [0, 0, 1, 0], [], []>} : vector<8x16xbf16>, vector<16x16xbf16>, vector<8x16xf32> -> vector<8x16xf32>
    %cst_39 = arith.constant dense<0xFF800000> : vector<8xf32>
    %128 = vector.multi_reduction <maximumf>, %127, %cst_39 [1] : vector<8x16xf32> to vector<8xf32>
    %129 = vector.shape_cast %128 : vector<8xf32> to vector<8x1xf32>
    %130 = vector.broadcast %129 : vector<8x1xf32> to vector<8x16xf32>
    %131 = arith.subf %127, %130 : vector<8x16xf32>
    %132 = math.exp %131 : vector<8x16xf32>
    %cst_40 = arith.constant dense<0.000000e+00> : vector<8xf32>
    %133 = vector.multi_reduction <add>, %132, %cst_40 [1] : vector<8x16xf32> to vector<8xf32>
    %134 = vector.shape_cast %133 : vector<8xf32> to vector<8x1xf32>
    %135 = tpu.reciprocal %134 {approx = true} : vector<8x1xf32> -> vector<8x1xf32>
    %136 = vector.broadcast %135 : vector<8x1xf32> to vector<8x16xf32>
    %137 = arith.mulf %132, %136 : vector<8x16xf32>
    %138 = arith.truncf %137 : vector<8x16xf32> to vector<8x16xbf16>
    %139 = vector.extract_strided_slice %12 {offsets = [0, 112], sizes = [16, 16], strides = [1, 1]} : vector<16x128xbf16> to vector<16x16xbf16>
    %cst_41 = arith.constant dense<0.000000e+00> : vector<8x16xf32>
    %140 = tpu.matmul %138, %139, %cst_41 {dimension_numbers = #tpu.dot_dimension_numbers<[1], [0], [0], [1], [0, 0, 1, 1], [], []>} : vector<8x16xbf16>, vector<16x16xbf16>, vector<8x16xf32> -> vector<8x16xf32>
    %141 = tpu.concatenate %28, %44, %60, %76, %92, %108, %124, %140 in 1 : vector<8x16xf32>, vector<8x16xf32>, vector<8x16xf32>, vector<8x16xf32>, vector<8x16xf32>, vector<8x16xf32>, vector<8x16xf32>, vector<8x16xf32> -> vector<8x128xf32>
    %142 = arith.truncf %141 : vector<8x128xf32> to vector<8x128xbf16>
    %c0_42 = arith.constant 0 : index
    %c0_43 = arith.constant 0 : index
    %143 = vector.load %arg5[%c0_42, %c0_43] : memref<128x128xbf16, #tpu.memory_space<vmem>>, vector<128x128xbf16>
    %cst_44 = arith.constant dense<0.000000e+00> : vector<8x128xf32>
    %144 = tpu.matmul %142, %143, %cst_44 {dimension_numbers = #tpu.dot_dimension_numbers<[1], [0], [0], [1], [0, 0, 1, 1], [], []>} : vector<8x128xbf16>, vector<128x128xbf16>, vector<8x128xf32> -> vector<8x128xf32>
    %c0_45 = arith.constant 0 : index
    %c0_46 = arith.constant 0 : index
    %145 = vector.load %arg6[%c0_45, %c0_46] : memref<1x128xf32, #tpu.memory_space<vmem>>, vector<1x128xf32>
    %146 = vector.broadcast %145 : vector<1x128xf32> to vector<8x128xf32>
    %147 = arith.addf %144, %146 : vector<8x128xf32>
    %c0_47 = arith.constant 0 : index
    %c0_48 = arith.constant 0 : index
    %c0_49 = arith.constant 0 : index
    %148 = vector.load %arg7[%c0_47, %c0_48, %c0_49] : memref<1x8x128xf32, #tpu.memory_space<vmem>>, vector<1x8x128xf32>
    %149 = vector.shape_cast %148 : vector<1x8x128xf32> to vector<8x128xf32>
    %150 = vector.shape_cast %147 : vector<8x128xf32> to vector<1x8x128xf32>
    tpu.vector_store %arg7[%c0_47, %c0_48, %c0_49], %150 {strides = array<i32>} : memref<1x8x128xf32, #tpu.memory_space<vmem>>, vector<1x8x128xf32>,
    return
  }
  func.func @transform_0(%arg0: i32) -> (i32, i32, i32) {
    %c0_i32 = arith.constant 0 : i32
    %c0_i32_0 = arith.constant 0 : i32
    %c0_i32_1 = arith.constant 0 : i32
    return %arg0, %c0_i32, %c0_i32_0 : i32, i32, i32
  }
  func.func @transform_1(%arg0: i32) -> (i32, i32, i32) {
    %c0_i32 = arith.constant 0 : i32
    %c0_i32_0 = arith.constant 0 : i32
    %c0_i32_1 = arith.constant 0 : i32
    return %arg0, %c0_i32, %c0_i32_0 : i32, i32, i32
  }
  func.func @transform_2(%arg0: i32) -> (i32, i32) {
    %c0_i32 = arith.constant 0 : i32
    %c0_i32_0 = arith.constant 0 : i32
    %c0_i32_1 = arith.constant 0 : i32
    return %c0_i32, %c0_i32_0 : i32, i32
  }
  func.func @transform_3(%arg0: i32) -> (i32, i32) {
    %c0_i32 = arith.constant 0 : i32
    %c0_i32_0 = arith.constant 0 : i32
    %c0_i32_1 = arith.constant 0 : i32
    return %c0_i32, %c0_i32_0 : i32, i32
  }
  func.func @transform_4(%arg0: i32) -> (i32, i32) {
    %c0_i32 = arith.constant 0 : i32
    %c0_i32_0 = arith.constant 0 : i32
    %c0_i32_1 = arith.constant 0 : i32
    return %c0_i32, %c0_i32_0 : i32, i32
  }
  func.func @transform_5(%arg0: i32) -> (i32, i32) {
    %c0_i32 = arith.constant 0 : i32
    %c0_i32_0 = arith.constant 0 : i32
    %c0_i32_1 = arith.constant 0 : i32
    return %c0_i32, %c0_i32_0 : i32, i32
  }
  func.func @transform_6(%arg0: i32) -> (i32, i32, i32) {
    %c0_i32 = arith.constant 0 : i32
    %c0_i32_0 = arith.constant 0 : i32
    %c0_i32_1 = arith.constant 0 : i32
    return %arg0, %c0_i32, %c0_i32_0 : i32, i32, i32
  }
}

</mosaic_0001>

<llo_original>
// kernel: cross_attention_forward.1
$region0: #{cross_attention_forward.1}
  #allocation0 [shape = 'u32[]', space=smem, size = 0x4, offset = 0x4, fixed_abs, tag = 'smem constant byte address 0x4 - core index']
  #allocation1 [shape = 'u32[72,128]{1,0:T(1,128)}', space=vmem, size = 0x9000, scoped, tag = 'internal scratch']
  %s0 = inlined_call_operand.vmem [shape: bf16[2,8,128], index: 0, kind: input, shape index: {}]
  %s1 = inlined_call_operand.vmem [shape: bf16[2,16,128], index: 1, kind: input, shape index: {}]
  %s2 = inlined_call_operand.vmem [shape: bf16[128,128], index: 2, kind: input, shape index: {}]
  %s3 = inlined_call_operand.hbm [shape: bf16[128,256], index: 3, kind: input, shape index: {}]
  %s4 = inlined_call_operand.hbm [shape: bf16[128,128], index: 4, kind: input, shape index: {}]
  %s5 = inlined_call_operand.vmem [shape: f32[1,128], index: 5, kind: input, shape index: {}]
  %s6 = inlined_call_operand.hbm [shape: f32[2,8,128], index: 6, kind: output, shape index: {}]
  %s7 = sld [smem:[#allocation0]]
  $region65: #{cross_attention_forward.1} parent=0
    _
  %s9 = ssub.s32 1, %s7
  %s10 = scalar_select 0, %s9, %s7
  $region1: #{cross_attention_forward.1} parent=0
    #allocation2 [shape = 'u8[65536]{0}', space=vmem, size = 0x10000, scoped, tag = 'input window, operand 3, single buffered']
    #allocation3 [shape = 's32[2]{0}', space=sflag, size = 0x8, scoped, tag = 'scoped memory for cross_attention_forward.1']
    #allocation4 [shape = 's32[2]{0}', space=sflag, size = 0x8, scoped, tag = 'scoped memory for cross_attention_forward.1']
    #allocation5 [shape = 'u8[32768]{0}', space=vmem, size = 0x8000, scoped, tag = 'input window, operand 4, single buffered']
    #allocation6 [shape = 's32[1]{0}', space=sflag, size = 0x4, scoped, tag = 'scoped memory for cross_attention_forward.1']
    #allocation7 [shape = 'u8[8192]{0}', space=vmem, size = 0x2000, scoped, tag = 'output window, operand 0']
    %11 = vsyncpa [#allocation3], 0
    %12 = vsyncpa [#allocation6], 0
    %13 = vsyncpa [#allocation4], 0
    %s14 = scalar_lea.sflag [#allocation4], 1
    %15 = vsyncpa %s14, 0
    loop: start=0, step=1, limit=4
    $region2: #{cross_attention_forward.1} parent=1 // loop_pre_header
      _
    $region3: #{cross_attention_forward.1} parent=1 // loop_header
      %s17 = sphi 0, %s21
      %p18 = scmp.ge.s32.totalorder %s17, 4
      %s27 = sphi 0, %s29
      %s30 = sphi 0, %s27
      %s31 = sphi 0, %s30
      %s47 = sphi 0, %s31
      %s53 = sphi 0, %s55
      %s56 = sphi 0, %s53
      %s57 = sphi 0, %s56
      %s73 = sphi 0, %s57
      %s77 = sphi 0, %s77
      %s79 = sphi 0, %s77
      %s80 = sphi 0, %s79
      %s94 = sphi 0, %s80
      %s98 = sphi 0, %s98
      %s100 = sphi 0, %s98
      %s101 = sphi 0, %s100
      %s115 = sphi 0, %s101
      %s119 = sphi 0, %s119
      %s121 = sphi 0, %s119
      %s122 = sphi 0, %s121
      %s136 = sphi 0, %s122
      %s140 = sphi 0, %s140
      %s142 = sphi 0, %s140
      %s143 = sphi 0, %s142
      %s157 = sphi 0, %s143
      %s163 = sphi 0, %s165
      %s166 = sphi 0, %s163
      %s167 = sphi 0, %s166
      %s183 = sphi 0, %s167
    $region4: #{cross_attention_forward.1} parent=1 // loop_header_branch
      %20 = sbr.rel (%p18) target = $region8
    $region5: #{cross_attention_forward.1} parent=1 // loop_body
      %s22 = ssub.s32 %s17, 1
      %s23 = ssub.s32 %s17, 2
      %s24 = sadd.s32 %s17, 1
      %s25 = ssub.s32 %s17, %s24
      %p26 = scmp.eq.s32.totalorder %s25, 0
      %s28 = sadd.s32 %s27, 1
      %s29 = scalar_select %p26, %s27, %s28
      %p32 = pneg %p26
      %p33 = scmp.eq.s32.totalorder %s17, 1
      %p34 = por %p32, %p33
      %p35 = scmp.ne.s32.totalorder %s27, %s30
      %p36 = scmp.eq.s32.totalorder %s17, 0
      %p37 = por %p35, %p36
      %p38 = scmp.ne.s32.totalorder %s27, %s30
      %p39 = scmp.eq.s32.totalorder %s22, 1
      %p40 = por %p38, %p39
      %p41 = scmp.ne.s32.totalorder %s30, %s31
      %p42 = scmp.eq.s32.totalorder %s22, 0
      %p43 = por %p41, %p42
      %p44 = scmp.ne.s32.totalorder %s30, %s31
      %p45 = scmp.eq.s32.totalorder %s23, 1
      %p46 = por %p44, %p45
      %p48 = scmp.ne.s32.totalorder %s31, %s47
      %p49 = scmp.eq.s32.totalorder %s23, 0
      %p50 = por %p48, %p49
      %s51 = ssub.s32 %s17, %s24
      %p52 = scmp.eq.s32.totalorder %s51, 0
      %s54 = sadd.s32 %s53, 1
      %s55 = scalar_select %p52, %s53, %s54
      %p58 = pneg %p52
      %p59 = scmp.eq.s32.totalorder %s17, 1
      %p60 = por %p58, %p59
      %p61 = scmp.ne.s32.totalorder %s53, %s56
      %p62 = scmp.eq.s32.totalorder %s17, 0
      %p63 = por %p61, %p62
      %p64 = scmp.ne.s32.totalorder %s53, %s56
      %p65 = scmp.eq.s32.totalorder %s22, 1
      %p66 = por %p64, %p65
      %p67 = scmp.ne.s32.totalorder %s56, %s57
      %p68 = scmp.eq.s32.totalorder %s22, 0
      %p69 = por %p67, %p68
      %p70 = scmp.ne.s32.totalorder %s56, %s57
      %p71 = scmp.eq.s32.totalorder %s23, 1
      %p72 = por %p70, %p71
      %p74 = scmp.ne.s32.totalorder %s57, %s73
      %p75 = scmp.eq.s32.totalorder %s23, 0
      %p76 = por %p74, %p75
      %s78 = sadd.s32 %s77, 1
      %p81 = scmp.eq.s32.totalorder %s17, 1
      %p82 = scmp.ne.s32.totalorder %s77, %s79
      %p83 = scmp.eq.s32.totalorder %s17, 0
      %p84 = por %p82, %p83
      %p85 = scmp.ne.s32.totalorder %s77, %s79
      %p86 = scmp.eq.s32.totalorder %s22, 1
      %p87 = por %p85, %p86
      %p88 = scmp.ne.s32.totalorder %s79, %s80
      %p89 = scmp.eq.s32.totalorder %s22, 0
      %p90 = por %p88, %p89
      %p91 = scmp.ne.s32.totalorder %s79, %s80
      %p92 = scmp.eq.s32.totalorder %s23, 1
      %p93 = por %p91, %p92
      %p95 = scmp.ne.s32.totalorder %s80, %s94
      %p96 = scmp.eq.s32.totalorder %s23, 0
      %p97 = por %p95, %p96
      %s99 = sadd.s32 %s98, 1
      %p102 = scmp.eq.s32.totalorder %s17, 1
      %p103 = scmp.ne.s32.totalorder %s98, %s100
      %p104 = scmp.eq.s32.totalorder %s17, 0
      %p105 = por %p103, %p104
      %p106 = scmp.ne.s32.totalorder %s98, %s100
      %p107 = scmp.eq.s32.totalorder %s22, 1
      %p108 = por %p106, %p107
      %p109 = scmp.ne.s32.totalorder %s100, %s101
      %p110 = scmp.eq.s32.totalorder %s22, 0
      %p111 = por %p109, %p110
      %p112 = scmp.ne.s32.totalorder %s100, %s101
      %p113 = scmp.eq.s32.totalorder %s23, 1
      %p114 = por %p112, %p113
      %p116 = scmp.ne.s32.totalorder %s101, %s115
      %p117 = scmp.eq.s32.totalorder %s23, 0
      %p118 = por %p116, %p117
      %s120 = sadd.s32 %s119, 1
      %p123 = scmp.eq.s32.totalorder %s17, 1
      %p124 = scmp.ne.s32.totalorder %s119, %s121
      %p125 = scmp.eq.s32.totalorder %s17, 0
      %p126 = por %p124, %p125
      %p127 = scmp.ne.s32.totalorder %s119, %s121
      %p128 = scmp.eq.s32.totalorder %s22, 1
      %p129 = por %p127, %p128
      %p130 = scmp.ne.s32.totalorder %s121, %s122
      %p131 = scmp.eq.s32.totalorder %s22, 0
      %p132 = por %p130, %p131
      %p133 = scmp.ne.s32.totalorder %s121, %s122
      %p134 = scmp.eq.s32.totalorder %s23, 1
      %p135 = por %p133, %p134
      %p137 = scmp.ne.s32.totalorder %s122, %s136
      %p138 = scmp.eq.s32.totalorder %s23, 0
      %p139 = por %p137, %p138
      %s141 = sadd.s32 %s140, 1
      %p144 = scmp.eq.s32.totalorder %s17, 1
      %p145 = scmp.ne.s32.totalorder %s140, %s142
      %p146 = scmp.eq.s32.totalorder %s17, 0
      %p147 = por %p145, %p146
      %p148 = scmp.ne.s32.totalorder %s140, %s142
      %p149 = scmp.eq.s32.totalorder %s22, 1
      %p150 = por %p148, %p149
      %p151 = scmp.ne.s32.totalorder %s142, %s143
      %p152 = scmp.eq.s32.totalorder %s22, 0
      %p153 = por %p151, %p152
      %p154 = scmp.ne.s32.totalorder %s142, %s143
      %p155 = scmp.eq.s32.totalorder %s23, 1
      %p156 = por %p154, %p155
      %p158 = scmp.ne.s32.totalorder %s143, %s157
      %p159 = scmp.eq.s32.totalorder %s23, 0
      %p160 = por %p158, %p159
      %s161 = ssub.s32 %s17, %s24
      %p162 = scmp.eq.s32.totalorder %s161, 0
      %s164 = sadd.s32 %s163, 1
      %s165 = scalar_select %p162, %s163, %s164
      %p168 = pneg %p162
      %p169 = scmp.eq.s32.totalorder %s17, 1
      %p170 = por %p168, %p169
      %p171 = scmp.ne.s32.totalorder %s163, %s166
      %p172 = scmp.eq.s32.totalorder %s17, 0
      %p173 = por %p171, %p172
      %p174 = scmp.ne.s32.totalorder %s163, %s166
      %p175 = scmp.eq.s32.totalorder %s22, 1
      %p176 = por %p174, %p175
      %p177 = scmp.ne.s32.totalorder %s166, %s167
      %p178 = scmp.eq.s32.totalorder %s22, 0
      %p179 = por %p177, %p178
      %p180 = scmp.ne.s32.totalorder %s166, %s167
      %p181 = scmp.eq.s32.totalorder %s23, 1
      %p182 = por %p180, %p181
      %p184 = scmp.ne.s32.totalorder %s167, %s183
      %p185 = scmp.eq.s32.totalorder %s23, 0
      %p186 = por %p184, %p185
      %p187 = scmp.le.s32.totalorder 1, %s17
      %p188 = scmp.lt.s32.totalorder %s17, 3
      %p189 = pnand %p187, %p188
      %p190 = pneg %p189
      // Predicated region
      $region9: #{cross_attention_forward.1} parent=5 // pred_check
        _
      $region10: #{cross_attention_forward.1} parent=5 // pred_check_branch
        %192 = sbr.rel (%p189) target = $region12
      $region11: #{cross_attention_forward.1} parent=5 // pred_region
        %s193 = ssub.s32 %s17, 1
        // Predicated region
        $region13: #{cross_attention_forward.1} parent=11 // pred_check
          %p194 = pneg %p90
        $region14: #{cross_attention_forward.1} parent=11 // pred_check_branch
          %196 = sbr.rel (%p194) target = $region16
        $region15: #{cross_attention_forward.1} parent=11 // pred_region
          _
        $region16: #{cross_attention_forward.1} parent=11 // pred_fallthru
          _
        // Predicated region
        $region17: #{cross_attention_forward.1} parent=11 // pred_check
          %p197 = pneg %p111
        $region18: #{cross_attention_forward.1} parent=11 // pred_check_branch
          %199 = sbr.rel (%p197) target = $region20
        $region19: #{cross_attention_forward.1} parent=11 // pred_region
          %201 = vsyncadd [#allocation3], 0
          %s202 = sshll.u32 %s3, 4
          %s203 = int_to_ptr.hbm [resolvable:$true] %s202
          %s204 = sshll.u32 [#allocation2], 4
          %s205 = int_to_ptr.vmem [resolvable:$true] %s204
          %210 = dma.hbm_to_vmem [thread:$0]  %s203, 2048, %s205, [#allocation3], 128, 128, 8
        $region20: #{cross_attention_forward.1} parent=11 // pred_fallthru
          _
        // Predicated region
        $region21: #{cross_attention_forward.1} parent=11 // pred_check
          %p211 = pneg %p132
        $region22: #{cross_attention_forward.1} parent=11 // pred_check_branch
          %213 = sbr.rel (%p211) target = $region24
        $region23: #{cross_attention_forward.1} parent=11 // pred_region
          %215 = vsyncadd [#allocation6], 0
          %s216 = sshll.u32 %s4, 4
          %s217 = int_to_ptr.hbm [resolvable:$true] %s216
          %s218 = sshll.u32 [#allocation5], 4
          %s219 = int_to_ptr.vmem [resolvable:$true] %s218
          %224 = dma.hbm_to_vmem [thread:$0]  %s217, 1024, %s219, [#allocation6], 64, 64, 4
        $region24: #{cross_attention_forward.1} parent=11 // pred_fallthru
          _
        // Predicated region
        $region25: #{cross_attention_forward.1} parent=11 // pred_check
          %p225 = pneg %p153
        $region26: #{cross_attention_forward.1} parent=11 // pred_check_branch
          %227 = sbr.rel (%p225) target = $region28
        $region27: #{cross_attention_forward.1} parent=11 // pred_region
          _
        $region28: #{cross_attention_forward.1} parent=11 // pred_fallthru
          _
      $region12: #{cross_attention_forward.1} parent=5 // pred_fallthru
        _
      %p228 = scmp.lt.s32.totalorder %s17, 2
      // Predicated region
      $region29: #{cross_attention_forward.1} parent=5 // pred_check
        %p229 = pneg %p228
      $region30: #{cross_attention_forward.1} parent=5 // pred_check_branch
        %231 = sbr.rel (%p229) target = $region32
      $region31: #{cross_attention_forward.1} parent=5 // pred_region
        // Predicated region
        $region33: #{cross_attention_forward.1} parent=31 // pred_check
          %p232 = pneg %p37
        $region34: #{cross_attention_forward.1} parent=31 // pred_check_branch
          %234 = sbr.rel (%p232) target = $region36
        $region35: #{cross_attention_forward.1} parent=31 // pred_region
          %p235 = scmp.lt.s32.totalorder %s17, 1
          %s236 = scalar_select %p235, %s17, 1
          %s237 = smul.addr %s236, 4
          %s238 = scalar_lea.vmem %s0, %s237
        $region36: #{cross_attention_forward.1} parent=31 // pred_fallthru
          _
        // Predicated region
        $region37: #{cross_attention_forward.1} parent=31 // pred_check
          %p239 = pneg %p63
        $region38: #{cross_attention_forward.1} parent=31 // pred_check_branch
          %241 = sbr.rel (%p239) target = $region40
        $region39: #{cross_attention_forward.1} parent=31 // pred_region
          %p242 = scmp.lt.s32.totalorder %s17, 1
          %s243 = scalar_select %p242, %s17, 1
          %s244 = smul.addr %s243, 2
          %s245 = smul.addr %s244, 4
          %s246 = scalar_lea.vmem %s1, %s245
        $region40: #{cross_attention_forward.1} parent=31 // pred_fallthru
          _
      $region32: #{cross_attention_forward.1} parent=5 // pred_fallthru
        _
      %p247 = scmp.le.s32.totalorder 1, %s17
      %p248 = scmp.lt.s32.totalorder %s17, 3
      %p249 = pnand %p247, %p248
      %p250 = pneg %p249
      // Predicated region
      $region41: #{cross_attention_forward.1} parent=5 // pred_check
        _
      $region42: #{cross_attention_forward.1} parent=5 // pred_check_branch
        %252 = sbr.rel (%p249) target = $region44
      $region43: #{cross_attention_forward.1} parent=5 // pred_region
        %s253 = ssub.s32 %s17, 1
        // Predicated region
        $region45: #{cross_attention_forward.1} parent=43 // pred_check
          %p254 = pneg %p111
        $region46: #{cross_attention_forward.1} parent=43 // pred_check_branch
          %256 = sbr.rel (%p254) target = $region48
        $region47: #{cross_attention_forward.1} parent=43 // pred_region
          %258 = dma.done [#allocation3], 2048
        $region48: #{cross_attention_forward.1} parent=43 // pred_fallthru
          _
        // Predicated region
        $region49: #{cross_attention_forward.1} parent=43 // pred_check
          %p259 = pneg %p132
        $region50: #{cross_attention_forward.1} parent=43 // pred_check_branch
          %261 = sbr.rel (%p259) target = $region52
        $region51: #{cross_attention_forward.1} parent=43 // pred_region
          %263 = dma.done [#allocation6], 1024
        $region52: #{cross_attention_forward.1} parent=43 // pred_fallthru
          _
        %p264 = scmp.lt.s32.totalorder %s22, 1
        %s265 = scalar_select %p264, %s22, 1
        %s266 = smul.addr %s265, 4
        %s267 = scalar_lea.vmem %s0, %s266
        %p268 = pneg %p43
        %p269 = pneg %p40
        %p270 = scmp.lt.s32.totalorder %s22, 1
        %s271 = scalar_select %p270, %s22, 1
        %s272 = smul.addr %s271, 2
        %s273 = smul.addr %s272, 4
        %s274 = scalar_lea.vmem %s1, %s273
        %p275 = pneg %p69
        %p276 = pneg %p66
        %p277 = pneg %p90
        %p278 = pneg %p87
        %p279 = pneg %p111
        %p280 = pneg %p108
        %p281 = pneg %p132
        %p282 = pneg %p129
        %p283 = pneg %p153
        %p284 = pneg %p150
        %p285 = pneg %p179
        %p286 = pneg %p176
        %s287 = sand.u32 %s166, 1
        %s288 = scalar_lea.sflag [#allocation4], %s287
        %s289 = sand.u32 %s166, 1
        %s290 = smul.addr %s289, 8
        %s291 = scalar_lea.vmem [#allocation7], %s290
        %p292 = scmp.lt.s32.totalorder %s22, 1
        %s293 = scalar_select %p292, %s22, 1
        %s294 = smul.addr %s293, 4
        %s295 = scalar_lea.vmem %s0, %s294
        %p296 = scmp.lt.s32.totalorder %s22, 1
        %s297 = scalar_select %p296, %s22, 1
        %s298 = smul.addr %s297, 2
        %s299 = smul.addr %s298, 4
        %s300 = scalar_lea.vmem %s1, %s299
        %v302 = vld [vmem:[%s295] sm:$0xf]
        %v303 = vld [vmem:[%s300] sm:$0xf]
        %v304 = vld [vmem:[%s300 + $0x4] sm:$0xf]
        %v305 = vld [vmem:[%s2] sm:$0xf]
        %v306 = vld [vmem:[%s2 + $0x4] sm:$0xf]
        %v307 = vld [vmem:[%s2 + $0x8] sm:$0xf]
        %v308 = vld [vmem:[%s2 + $0xc] sm:$0xf]
        %v309 = vld [vmem:[%s2 + $0x10] sm:$0xf]
        %v310 = vld [vmem:[%s2 + $0x14] sm:$0xf]
        %v311 = vld [vmem:[%s2 + $0x18] sm:$0xf]
        %v312 = vld [vmem:[%s2 + $0x1c] sm:$0xf]
        %v313 = vld [vmem:[%s2 + $0x20] sm:$0xf]
        %v314 = vld [vmem:[%s2 + $0x24] sm:$0xf]
        %v315 = vld [vmem:[%s2 + $0x28] sm:$0xf]
        %v316 = vld [vmem:[%s2 + $0x2c] sm:$0xf]
        %v317 = vld [vmem:[%s2 + $0x30] sm:$0xf]
        %v318 = vld [vmem:[%s2 + $0x34] sm:$0xf]
        %v319 = vld [vmem:[%s2 + $0x38] sm:$0xf]
        %v320 = vld [vmem:[%s2 + $0x3c] sm:$0xf]
        %v337 = vunpack.c.l.b16 %v305
        %v338 = vunpack.c.l.b16 %v306
        %v339 = vunpack.c.l.b16 %v307
        %v340 = vunpack.c.l.b16 %v308
        %v341 = vunpack.c.l.b16 %v309
        %v342 = vunpack.c.l.b16 %v310
        %v343 = vunpack.c.l.b16 %v311
        %v344 = vunpack.c.l.b16 %v312
        %v345 = vunpack.c.l.b16 %v313
        %v346 = vunpack.c.l.b16 %v314
        %v347 = vunpack.c.l.b16 %v315
        %v348 = vunpack.c.l.b16 %v316
        %v349 = vunpack.c.l.b16 %v317
        %v350 = vunpack.c.l.b16 %v318
        %v351 = vunpack.c.l.b16 %v319
        %v352 = vunpack.c.l.b16 %v320
        %v353 = vpack.c.b16 %v338, %v337
        %v354 = vpack.c.b16 %v340, %v339
        %v355 = vpack.c.b16 %v342, %v341
        %v356 = vpack.c.b16 %v344, %v343
        %v357 = vpack.c.b16 %v346, %v345
        %v358 = vpack.c.b16 %v348, %v347
        %v359 = vpack.c.b16 %v350, %v349
        %v360 = vpack.c.b16 %v352, %v351
        %369 = vmatpush.bf16.msra.mxu0 %v360
        %370 = vmatpush.bf16.msra.mxu0 %v359
        %371 = vmatpush.bf16.msra.mxu0 %v358
        %372 = vmatpush.bf16.msra.mxu0 %v357
        %373 = vmatpush.bf16.msra.mxu0 %v356
        %374 = vmatpush.bf16.msra.mxu0 %v355
        %375 = vmatpush.bf16.msra.mxu0 %v354
        %376 = vmatpush.bf16.msra.mxu0 %v353
        %377 = vmatmul.bf16.gmra.mxu0 %v302
        %v378 = vpop.f32.mrf.mxu0
        %v379 = vadd.f32 0.0, %v378
        %v380 = vpop.f32.mrf.mxu0
        %381 = vdwg.mxu0
        %v382 = vld [vmem:[#allocation2] sm:$0xff]
        %v383 = vld [vmem:[#allocation2 + $0x8] sm:$0xff]
        %v384 = vld [vmem:[#allocation2 + $0x10] sm:$0xff]
        %v385 = vld [vmem:[#allocation2 + $0x18] sm:$0xff]
        %v386 = vld [vmem:[#allocation2 + $0x20] sm:$0xff]
        %v387 = vld [vmem:[#allocation2 + $0x28] sm:$0xff]
        %v388 = vld [vmem:[#allocation2 + $0x30] sm:$0xff]
        %v389 = vld [vmem:[#allocation2 + $0x38] sm:$0xff]
        %v390 = vld [vmem:[#allocation2 + $0x40] sm:$0xff]
        %v391 = vld [vmem:[#allocation2 + $0x48] sm:$0xff]
        %v392 = vld [vmem:[#allocation2 + $0x50] sm:$0xff]
        %v393 = vld [vmem:[#allocation2 + $0x58] sm:$0xff]
        %v394 = vld [vmem:[#allocation2 + $0x60] sm:$0xff]
        %v395 = vld [vmem:[#allocation2 + $0x68] sm:$0xff]
        %v396 = vld [vmem:[#allocation2 + $0x70] sm:$0xff]
        %v397 = vld [vmem:[#allocation2 + $0x78] sm:$0xff]
        %v400 = vunpack.c.l.b16 %v303
        %v401 = vunpack.c.l.b16 %v304
        %v402 = vpack.c.b16 %v401, %v400
        %v420 = vunpack.c.l.b16 %v382
        %v421 = vunpack.c.h.b16 %v382
        %v422 = vunpack.c.l.b16 %v383
        %v423 = vunpack.c.h.b16 %v383
        %v424 = vunpack.c.l.b16 %v384
        %v425 = vunpack.c.h.b16 %v384
        %v426 = vunpack.c.l.b16 %v385
        %v427 = vunpack.c.h.b16 %v385
        %v428 = vunpack.c.l.b16 %v386
        %v429 = vunpack.c.h.b16 %v386
        %v430 = vunpack.c.l.b16 %v387
        %v431 = vunpack.c.h.b16 %v387
        %v432 = vunpack.c.l.b16 %v388
        %v433 = vunpack.c.h.b16 %v388
        %v434 = vunpack.c.l.b16 %v389
        %v435 = vunpack.c.h.b16 %v389
        %v436 = vunpack.c.l.b16 %v390
        %v437 = vunpack.c.h.b16 %v390
        %v438 = vunpack.c.l.b16 %v391
        %v439 = vunpack.c.h.b16 %v391
        %v440 = vunpack.c.l.b16 %v392
        %v441 = vunpack.c.h.b16 %v392
        %v442 = vunpack.c.l.b16 %v393
        %v443 = vunpack.c.h.b16 %v393
        %v444 = vunpack.c.l.b16 %v394
        %v445 = vunpack.c.h.b16 %v394
        %v446 = vunpack.c.l.b16 %v395
        %v447 = vunpack.c.h.b16 %v395
        %v448 = vunpack.c.l.b16 %v396
        %v449 = vunpack.c.h.b16 %v396
        %v450 = vunpack.c.l.b16 %v397
        %v451 = vunpack.c.h.b16 %v397
        %v452 = vpack.c.b16 %v422, %v420
        %v453 = vpack.c.b16 %v423, %v421
        %v454 = vpack.c.b16 %v426, %v424
        %v455 = vpack.c.b16 %v427, %v425
        %v456 = vpack.c.b16 %v430, %v428
        %v457 = vpack.c.b16 %v431, %v429
        %v458 = vpack.c.b16 %v434, %v432
        %v459 = vpack.c.b16 %v435, %v433
        %v460 = vpack.c.b16 %v438, %v436
        %v461 = vpack.c.b16 %v439, %v437
        %v462 = vpack.c.b16 %v442, %v440
        %v463 = vpack.c.b16 %v443, %v441
        %v464 = vpack.c.b16 %v446, %v444
        %v465 = vpack.c.b16 %v447, %v445
        %v466 = vpack.c.b16 %v450, %v448
        %v467 = vpack.c.b16 %v451, %v449
        %484 = vmatpush.bf16.msra.mxu0 %v466
        %485 = vmatpush.bf16.msra.mxu0 %v464
        %486 = vmatpush.bf16.msra.mxu0 %v462
        %487 = vmatpush.bf16.msra.mxu0 %v460
        %488 = vmatpush.bf16.msra.mxu0 %v458
        %489 = vmatpush.bf16.msra.mxu0 %v456
        %490 = vmatpush.bf16.msra.mxu0 %v454
        %491 = vmatpush.bf16.msra.mxu0 %v452
        %492 = vmatmul.bf16.gmra.mxu0 %v402
        %v493 = vpop.f32.mrf.mxu0
        %v494 = vadd.f32 0.0, %v493
        %v495 = vpop.f32.mrf.mxu0
        %v496 = vadd.f32 0.0, %v495
        %497 = vdwg.mxu0
        %498 = vmatpush.bf16.msra.mxu0 %v467
        %499 = vmatpush.bf16.msra.mxu0 %v465
        %500 = vmatpush.bf16.msra.mxu0 %v463
        %501 = vmatpush.bf16.msra.mxu0 %v461
        %502 = vmatpush.bf16.msra.mxu0 %v459
        %503 = vmatpush.bf16.msra.mxu0 %v457
        %504 = vmatpush.bf16.msra.mxu0 %v455
        %505 = vmatpush.bf16.msra.mxu0 %v453
        %506 = vmatmul.bf16.gmra.mxu0 %v402
        %v507 = vpop.f32.mrf.mxu0
        %v508 = vadd.f32 0.0, %v507
        %v509 = vpop.f32.mrf.mxu0
        %v510 = vadd.f32 0.0, %v509
        %511 = vdwg.mxu0
        %v512 = vpack.c.bf16 %v379, %v379
        %v513 = vpack.c.bf16 %v494, %v494
        %v514 = vpack.c.bf16 %v496, %v496
        %v515 = vpack.c.bf16 %v508, %v508
        %v516 = vpack.c.bf16 %v510, %v510
        %v519 = vunpack.c.l.b16 %v513
        %v520 = vunpack.c.l.b16 %v514
        %v521 = vpack.c.b16 %v520, %v519
        %vm522 = vcmask 130048
        %v524 = vsel %vm522, %v512, 0
        %v527 = vsel %vm522, %v521, 0
        %529 = vmatpush.bf16.xpose.msra.mxu0 0
        %530 = vmatpush.bf16.xpose.msra.mxu0 0
        %531 = vmatpush.bf16.xpose.msra.mxu0 0
        %532 = vmatpush.bf16.xpose.msra.mxu0 0
        %533 = vmatpush.bf16.xpose.msra.mxu0 0
        %534 = vmatpush.bf16.xpose.msra.mxu0 0
        %535 = vmatpush.bf16.xpose.msra.mxu0 0
        %536 = vmatpush.bf16.xpose.msra.mxu0 %v527
        %537 = vmatmul.bf16.gmra.mxu0 %v524
        %v538 = vpop.f32.mrf.mxu0
        %v539 = vadd.f32 0.0, %v538
        %v540 = vpop.f32.mrf.mxu0
        %541 = vdwg.mxu0
        %v542 = vsel %vm522, %v539, -inf
        %543 = vmax.xlane.f32.xlu0 %v542
        %v544 = vpop.xlane.xlu0 %543
        %v545 = vsub.f32 %v539, %v544
        %v546 = vmul.f32 %v545, 1.442695
        %v547 = vpow.pop %v546
        %v548 = vsel %vm522, %v547, 0.0
        %549 = vadd.xlane.f32.xlu0 %v548
        %v550 = vpop.xlane.xlu0 %549
        %v551 = vrcp.pop %v550
        %v552 = vmul.f32 %v547, %v551
        %v553 = vpack.c.bf16 %v552, %v552
        %v556 = vunpack.c.l.b16 %v515
        %v557 = vunpack.c.l.b16 %v516
        %v558 = vpack.c.b16 %v557, %v556
        %v561 = vsel %vm522, %v553, 0
        %563 = vmatpush.bf16.msra.mxu0 0
        %564 = vmatpush.bf16.msra.mxu0 0
        %565 = vmatpush.bf16.msra.mxu0 0
        %566 = vmatpush.bf16.msra.mxu0 0
        %567 = vmatpush.bf16.msra.mxu0 0
        %568 = vmatpush.bf16.msra.mxu0 0
        %569 = vmatpush.bf16.msra.mxu0 0
        %570 = vmatpush.bf16.msra.mxu0 %v558
        %571 = vmatmul.bf16.gmra.mxu0 %v561
        %v572 = vpop.f32.mrf.mxu0
        %v573 = vadd.f32 0.0, %v572
        %v574 = vpop.f32.mrf.mxu0
        %575 = vdwg.mxu0
        %v577 = vunpack.c.l.b16 %v512
        %v578 = vpack.c.b16 %v577, %v577
        %579 = vrot.lane.b32.xlu0 %v578, 112
        %v580 = vpop.permute.xlu0 %579
        %581 = vrot.lane.b32.xlu0 %v521, 112
        %v582 = vpop.permute.xlu0 %581
        %v584 = vsel %vm522, %v580, 0
        %v587 = vsel %vm522, %v582, 0
        %589 = vmatpush.bf16.xpose.msra.mxu0 0
        %590 = vmatpush.bf16.xpose.msra.mxu0 0
        %591 = vmatpush.bf16.xpose.msra.mxu0 0
        %592 = vmatpush.bf16.xpose.msra.mxu0 0
        %593 = vmatpush.bf16.xpose.msra.mxu0 0
        %594 = vmatpush.bf16.xpose.msra.mxu0 0
        %595 = vmatpush.bf16.xpose.msra.mxu0 0
        %596 = vmatpush.bf16.xpose.msra.mxu0 %v587
        %597 = vmatmul.bf16.gmra.mxu0 %v584
        %v598 = vpop.f32.mrf.mxu0
        %v599 = vadd.f32 0.0, %v598
        %v600 = vpop.f32.mrf.mxu0
        %601 = vdwg.mxu0
        %v602 = vsel %vm522, %v599, -inf
        %603 = vmax.xlane.f32.xlu0 %v602
        %v604 = vpop.xlane.xlu0 %603
        %v605 = vsub.f32 %v599, %v604
        %v606 = vmul.f32 %v605, 1.442695
        %v607 = vpow.pop %v606
        %v608 = vsel %vm522, %v607, 0.0
        %609 = vadd.xlane.f32.xlu0 %v608
        %v610 = vpop.xlane.xlu0 %609
        %v611 = vrcp.pop %v610
        %v612 = vmul.f32 %v607, %v611
        %v613 = vpack.c.bf16 %v612, %v612
        %614 = vrot.lane.b32.xlu0 %v558, 112
        %v615 = vpop.permute.xlu0 %614
        %v618 = vsel %vm522, %v613, 0
        %620 = vmatpush.bf16.msra.mxu0 0
        %621 = vmatpush.bf16.msra.mxu0 0
        %622 = vmatpush.bf16.msra.mxu0 0
        %623 = vmatpush.bf16.msra.mxu0 0
        %624 = vmatpush.bf16.msra.mxu0 0
        %625 = vmatpush.bf16.msra.mxu0 0
        %626 = vmatpush.bf16.msra.mxu0 0
        %627 = vmatpush.bf16.msra.mxu0 %v615
        %628 = vmatmul.bf16.gmra.mxu0 %v618
        %v629 = vpop.f32.mrf.mxu0
        %v630 = vadd.f32 0.0, %v629
        %v631 = vpop.f32.mrf.mxu0
        %632 = vdwg.mxu0
        %633 = vrot.lane.b32.xlu0 %v578, 96
        %v634 = vpop.permute.xlu0 %633
        %635 = vrot.lane.b32.xlu0 %v521, 96
        %v636 = vpop.permute.xlu0 %635
        %v638 = vsel %vm522, %v634, 0
        %v641 = vsel %vm522, %v636, 0
        %643 = vmatpush.bf16.xpose.msra.mxu0 0
        %644 = vmatpush.bf16.xpose.msra.mxu0 0
        %645 = vmatpush.bf16.xpose.msra.mxu0 0
        %646 = vmatpush.bf16.xpose.msra.mxu0 0
        %647 = vmatpush.bf16.xpose.msra.mxu0 0
        %648 = vmatpush.bf16.xpose.msra.mxu0 0
        %649 = vmatpush.bf16.xpose.msra.mxu0 0
        %650 = vmatpush.bf16.xpose.msra.mxu0 %v641
        %651 = vmatmul.bf16.gmra.mxu0 %v638
        %v652 = vpop.f32.mrf.mxu0
        %v653 = vadd.f32 0.0, %v652
        %v654 = vpop.f32.mrf.mxu0
        %655 = vdwg.mxu0
        %v656 = vsel %vm522, %v653, -inf
        %657 = vmax.xlane.f32.xlu0 %v656
        %v658 = vpop.xlane.xlu0 %657
        %v659 = vsub.f32 %v653, %v658
        %v660 = vmul.f32 %v659, 1.442695
        %v661 = vpow.pop %v660
        %v662 = vsel %vm522, %v661, 0.0
        %663 = vadd.xlane.f32.xlu0 %v662
        %v664 = vpop.xlane.xlu0 %663
        %v665 = vrcp.pop %v664
        %v666 = vmul.f32 %v661, %v665
        %v667 = vpack.c.bf16 %v666, %v666
        %668 = vrot.lane.b32.xlu0 %v558, 96
        %v669 = vpop.permute.xlu0 %668
        %v672 = vsel %vm522, %v667, 0
        %674 = vmatpush.bf16.msra.mxu0 0
        %675 = vmatpush.bf16.msra.mxu0 0
        %676 = vmatpush.bf16.msra.mxu0 0
        %677 = vmatpush.bf16.msra.mxu0 0
        %678 = vmatpush.bf16.msra.mxu0 0
        %679 = vmatpush.bf16.msra.mxu0 0
        %680 = vmatpush.bf16.msra.mxu0 0
        %681 = vmatpush.bf16.msra.mxu0 %v669
        %682 = vmatmul.bf16.gmra.mxu0 %v672
        %v683 = vpop.f32.mrf.mxu0
        %v684 = vadd.f32 0.0, %v683
        %v685 = vpop.f32.mrf.mxu0
        %686 = vdwg.mxu0
        %687 = vrot.lane.b32.xlu0 %v578, 80
        %v688 = vpop.permute.xlu0 %687
        %689 = vrot.lane.b32.xlu0 %v521, 80
        %v690 = vpop.permute.xlu0 %689
        %v692 = vsel %vm522, %v688, 0
        %v695 = vsel %vm522, %v690, 0
        %697 = vmatpush.bf16.xpose.msra.mxu0 0
        %698 = vmatpush.bf16.xpose.msra.mxu0 0
        %699 = vmatpush.bf16.xpose.msra.mxu0 0
        %700 = vmatpush.bf16.xpose.msra.mxu0 0
        %701 = vmatpush.bf16.xpose.msra.mxu0 0
        %702 = vmatpush.bf16.xpose.msra.mxu0 0
        %703 = vmatpush.bf16.xpose.msra.mxu0 0
        %704 = vmatpush.bf16.xpose.msra.mxu0 %v695
        %705 = vmatmul.bf16.gmra.mxu0 %v692
        %v706 = vpop.f32.mrf.mxu0
        %v707 = vadd.f32 0.0, %v706
        %v708 = vpop.f32.mrf.mxu0
        %709 = vdwg.mxu0
        %v710 = vsel %vm522, %v707, -inf
        %711 = vmax.xlane.f32.xlu0 %v710
        %v712 = vpop.xlane.xlu0 %711
        %v713 = vsub.f32 %v707, %v712
        %v714 = vmul.f32 %v713, 1.442695
        %v715 = vpow.pop %v714
        %v716 = vsel %vm522, %v715, 0.0
        %717 = vadd.xlane.f32.xlu0 %v716
        %v718 = vpop.xlane.xlu0 %717
        %v719 = vrcp.pop %v718
        %v720 = vmul.f32 %v715, %v719
        %v721 = vpack.c.bf16 %v720, %v720
        %722 = vrot.lane.b32.xlu0 %v558, 80
        %v723 = vpop.permute.xlu0 %722
        %v726 = vsel %vm522, %v721, 0
        %728 = vmatpush.bf16.msra.mxu0 0
        %729 = vmatpush.bf16.msra.mxu0 0
        %730 = vmatpush.bf16.msra.mxu0 0
        %731 = vmatpush.bf16.msra.mxu0 0
        %732 = vmatpush.bf16.msra.mxu0 0
        %733 = vmatpush.bf16.msra.mxu0 0
        %734 = vmatpush.bf16.msra.mxu0 0
        %735 = vmatpush.bf16.msra.mxu0 %v723
        %736 = vmatmul.bf16.gmra.mxu0 %v726
        %v737 = vpop.f32.mrf.mxu0
        %v738 = vadd.f32 0.0, %v737
        %v739 = vpop.f32.mrf.mxu0
        %740 = vdwg.mxu0
        %741 = vrot.lane.b32.xlu0 %v578, 64
        %v742 = vpop.permute.xlu0 %741
        %743 = vrot.lane.b32.xlu0 %v521, 64
        %v744 = vpop.permute.xlu0 %743
        %v746 = vsel %vm522, %v742, 0
        %v749 = vsel %vm522, %v744, 0
        %751 = vmatpush.bf16.xpose.msra.mxu0 0
        %752 = vmatpush.bf16.xpose.msra.mxu0 0
        %753 = vmatpush.bf16.xpose.msra.mxu0 0
        %754 = vmatpush.bf16.xpose.msra.mxu0 0
        %755 = vmatpush.bf16.xpose.msra.mxu0 0
        %756 = vmatpush.bf16.xpose.msra.mxu0 0
        %757 = vmatpush.bf16.xpose.msra.mxu0 0
        %758 = vmatpush.bf16.xpose.msra.mxu0 %v749
        %759 = vmatmul.bf16.gmra.mxu0 %v746
        %v760 = vpop.f32.mrf.mxu0
        %v761 = vadd.f32 0.0, %v760
        %v762 = vpop.f32.mrf.mxu0
        %763 = vdwg.mxu0
        %v764 = vsel %vm522, %v761, -inf
        %765 = vmax.xlane.f32.xlu0 %v764
        %v766 = vpop.xlane.xlu0 %765
        %v767 = vsub.f32 %v761, %v766
        %v768 = vmul.f32 %v767, 1.442695
        %v769 = vpow.pop %v768
        %v770 = vsel %vm522, %v769, 0.0
        %771 = vadd.xlane.f32.xlu0 %v770
        %v772 = vpop.xlane.xlu0 %771
        %v773 = vrcp.pop %v772
        %v774 = vmul.f32 %v769, %v773
        %v775 = vpack.c.bf16 %v774, %v774
        %776 = vrot.lane.b32.xlu0 %v558, 64
        %v777 = vpop.permute.xlu0 %776
        %v780 = vsel %vm522, %v775, 0
        %782 = vmatpush.bf16.msra.mxu0 0
        %783 = vmatpush.bf16.msra.mxu0 0
        %784 = vmatpush.bf16.msra.mxu0 0
        %785 = vmatpush.bf16.msra.mxu0 0
        %786 = vmatpush.bf16.msra.mxu0 0
        %787 = vmatpush.bf16.msra.mxu0 0
        %788 = vmatpush.bf16.msra.mxu0 0
        %789 = vmatpush.bf16.msra.mxu0 %v777
        %790 = vmatmul.bf16.gmra.mxu0 %v780
        %v791 = vpop.f32.mrf.mxu0
        %v792 = vadd.f32 0.0, %v791
        %v793 = vpop.f32.mrf.mxu0
        %794 = vdwg.mxu0
        %795 = vrot.lane.b32.xlu0 %v578, 48
        %v796 = vpop.permute.xlu0 %795
        %797 = vrot.lane.b32.xlu0 %v521, 48
        %v798 = vpop.permute.xlu0 %797
        %v800 = vsel %vm522, %v796, 0
        %v803 = vsel %vm522, %v798, 0
        %805 = vmatpush.bf16.xpose.msra.mxu0 0
        %806 = vmatpush.bf16.xpose.msra.mxu0 0
        %807 = vmatpush.bf16.xpose.msra.mxu0 0
        %808 = vmatpush.bf16.xpose.msra.mxu0 0
        %809 = vmatpush.bf16.xpose.msra.mxu0 0
        %810 = vmatpush.bf16.xpose.msra.mxu0 0
        %811 = vmatpush.bf16.xpose.msra.mxu0 0
        %812 = vmatpush.bf16.xpose.msra.mxu0 %v803
        %813 = vmatmul.bf16.gmra.mxu0 %v800
        %v814 = vpop.f32.mrf.mxu0
        %v815 = vadd.f32 0.0, %v814
        %v816 = vpop.f32.mrf.mxu0
        %817 = vdwg.mxu0
        %v818 = vsel %vm522, %v815, -inf
        %819 = vmax.xlane.f32.xlu0 %v818
        %v820 = vpop.xlane.xlu0 %819
        %v821 = vsub.f32 %v815, %v820
        %v822 = vmul.f32 %v821, 1.442695
        %v823 = vpow.pop %v822
        %v824 = vsel %vm522, %v823, 0.0
        %825 = vadd.xlane.f32.xlu0 %v824
        %v826 = vpop.xlane.xlu0 %825
        %v827 = vrcp.pop %v826
        %v828 = vmul.f32 %v823, %v827
        %v829 = vpack.c.bf16 %v828, %v828
        %830 = vrot.lane.b32.xlu0 %v558, 48
        %v831 = vpop.permute.xlu0 %830
        %v834 = vsel %vm522, %v829, 0
        %836 = vmatpush.bf16.msra.mxu0 0
        %837 = vmatpush.bf16.msra.mxu0 0
        %838 = vmatpush.bf16.msra.mxu0 0
        %839 = vmatpush.bf16.msra.mxu0 0
        %840 = vmatpush.bf16.msra.mxu0 0
        %841 = vmatpush.bf16.msra.mxu0 0
        %842 = vmatpush.bf16.msra.mxu0 0
        %843 = vmatpush.bf16.msra.mxu0 %v831
        %844 = vmatmul.bf16.gmra.mxu0 %v834
        %v845 = vpop.f32.mrf.mxu0
        %v846 = vadd.f32 0.0, %v845
        %v847 = vpop.f32.mrf.mxu0
        %848 = vdwg.mxu0
        %849 = vrot.lane.b32.xlu0 %v578, 32
        %v850 = vpop.permute.xlu0 %849
        %851 = vrot.lane.b32.xlu0 %v521, 32
        %v852 = vpop.permute.xlu0 %851
        %v854 = vsel %vm522, %v850, 0
        %v857 = vsel %vm522, %v852, 0
        %859 = vmatpush.bf16.xpose.msra.mxu0 0
        %860 = vmatpush.bf16.xpose.msra.mxu0 0
        %861 = vmatpush.bf16.xpose.msra.mxu0 0
        %862 = vmatpush.bf16.xpose.msra.mxu0 0
        %863 = vmatpush.bf16.xpose.msra.mxu0 0
        %864 = vmatpush.bf16.xpose.msra.mxu0 0
        %865 = vmatpush.bf16.xpose.msra.mxu0 0
        %866 = vmatpush.bf16.xpose.msra.mxu0 %v857
        %867 = vmatmul.bf16.gmra.mxu0 %v854
        %v868 = vpop.f32.mrf.mxu0
        %v869 = vadd.f32 0.0, %v868
        %v870 = vpop.f32.mrf.mxu0
        %871 = vdwg.mxu0
        %v872 = vsel %vm522, %v869, -inf
        %873 = vmax.xlane.f32.xlu0 %v872
        %v874 = vpop.xlane.xlu0 %873
        %v875 = vsub.f32 %v869, %v874
        %v876 = vmul.f32 %v875, 1.442695
        %v877 = vpow.pop %v876
        %v878 = vsel %vm522, %v877, 0.0
        %879 = vadd.xlane.f32.xlu0 %v878
        %v880 = vpop.xlane.xlu0 %879
        %v881 = vrcp.pop %v880
        %v882 = vmul.f32 %v877, %v881
        %v883 = vpack.c.bf16 %v882, %v882
        %884 = vrot.lane.b32.xlu0 %v558, 32
        %v885 = vpop.permute.xlu0 %884
        %v888 = vsel %vm522, %v883, 0
        %890 = vmatpush.bf16.msra.mxu0 0
        %891 = vmatpush.bf16.msra.mxu0 0
        %892 = vmatpush.bf16.msra.mxu0 0
        %893 = vmatpush.bf16.msra.mxu0 0
        %894 = vmatpush.bf16.msra.mxu0 0
        %895 = vmatpush.bf16.msra.mxu0 0
        %896 = vmatpush.bf16.msra.mxu0 0
        %897 = vmatpush.bf16.msra.mxu0 %v885
        %898 = vmatmul.bf16.gmra.mxu0 %v888
        %v899 = vpop.f32.mrf.mxu0
        %v900 = vadd.f32 0.0, %v899
        %v901 = vpop.f32.mrf.mxu0
        %902 = vdwg.mxu0
        %903 = vrot.lane.b32.xlu0 %v578, 16
        %v904 = vpop.permute.xlu0 %903
        %905 = vrot.lane.b32.xlu0 %v521, 16
        %v906 = vpop.permute.xlu0 %905
        %v908 = vsel %vm522, %v904, 0
        %v911 = vsel %vm522, %v906, 0
        %913 = vmatpush.bf16.xpose.msra.mxu0 0
        %914 = vmatpush.bf16.xpose.msra.mxu0 0
        %915 = vmatpush.bf16.xpose.msra.mxu0 0
        %916 = vmatpush.bf16.xpose.msra.mxu0 0
        %917 = vmatpush.bf16.xpose.msra.mxu0 0
        %918 = vmatpush.bf16.xpose.msra.mxu0 0
        %919 = vmatpush.bf16.xpose.msra.mxu0 0
        %920 = vmatpush.bf16.xpose.msra.mxu0 %v911
        %921 = vmatmul.bf16.gmra.mxu0 %v908
        %v922 = vpop.f32.mrf.mxu0
        %v923 = vadd.f32 0.0, %v922
        %v924 = vpop.f32.mrf.mxu0
        %925 = vdwg.mxu0
        %v926 = vsel %vm522, %v923, -inf
        %927 = vmax.xlane.f32.xlu0 %v926
        %v928 = vpop.xlane.xlu0 %927
        %v929 = vsub.f32 %v923, %v928
        %v930 = vmul.f32 %v929, 1.442695
        %v931 = vpow.pop %v930
        %v932 = vsel %vm522, %v931, 0.0
        %933 = vadd.xlane.f32.xlu0 %v932
        %v934 = vpop.xlane.xlu0 %933
        %v935 = vrcp.pop %v934
        %v936 = vmul.f32 %v931, %v935
        %v937 = vpack.c.bf16 %v936, %v936
        %938 = vrot.lane.b32.xlu0 %v558, 16
        %v939 = vpop.permute.xlu0 %938
        %v942 = vsel %vm522, %v937, 0
        %944 = vmatpush.bf16.msra.mxu0 0
        %945 = vmatpush.bf16.msra.mxu0 0
        %946 = vmatpush.bf16.msra.mxu0 0
        %947 = vmatpush.bf16.msra.mxu0 0
        %948 = vmatpush.bf16.msra.mxu0 0
        %949 = vmatpush.bf16.msra.mxu0 0
        %950 = vmatpush.bf16.msra.mxu0 0
        %951 = vmatpush.bf16.msra.mxu0 %v939
        %952 = vmatmul.bf16.gmra.mxu0 %v942
        %v953 = vpop.f32.mrf.mxu0
        %v954 = vadd.f32 0.0, %v953
        %v955 = vpop.f32.mrf.mxu0
        %956 = vdwg.mxu0
        %958 = vrot.lane.b32.xlu0 %v630, 16
        %v959 = vpop.permute.xlu0 %958
        %962 = vrot.lane.b32.xlu0 %v684, 32
        %v963 = vpop.permute.xlu0 %962
        %966 = vrot.lane.b32.xlu0 %v738, 48
        %v967 = vpop.permute.xlu0 %966
        %970 = vrot.lane.b32.xlu0 %v792, 64
        %v971 = vpop.permute.xlu0 %970
        %974 = vrot.lane.b32.xlu0 %v846, 80
        %v975 = vpop.permute.xlu0 %974
        %978 = vrot.lane.b32.xlu0 %v900, 96
        %v979 = vpop.permute.xlu0 %978
        %982 = vrot.lane.b32.xlu0 %v954, 112
        %v983 = vpop.permute.xlu0 %982
        %v985 = vsel %vm522, %v573, %v959
        %vm986 = vcmask 261120
        %v987 = vsel %vm986, %v985, %v963
        %vm988 = vcmask 392192
        %v989 = vsel %vm988, %v987, %v967
        %vm990 = vcmask 523264
        %v991 = vsel %vm990, %v989, %v971
        %vm992 = vcmask 654336
        %v993 = vsel %vm992, %v991, %v975
        %vm994 = vcmask 785408
        %v995 = vsel %vm994, %v993, %v979
        %vm996 = vcmask 916480
        %v997 = vsel %vm996, %v995, %v983
        %v998 = vpack.c.bf16 %v997, %v997
        %v999 = vld [vmem:[#allocation5] sm:$0xf]
        %v1000 = vld [vmem:[#allocation5 + $0x4] sm:$0xf]
        %v1001 = vld [vmem:[#allocation5 + $0x8] sm:$0xf]
        %v1002 = vld [vmem:[#allocation5 + $0xc] sm:$0xf]
        %v1003 = vld [vmem:[#allocation5 + $0x10] sm:$0xf]
        %v1004 = vld [vmem:[#allocation5 + $0x14] sm:$0xf]
        %v1005 = vld [vmem:[#allocation5 + $0x18] sm:$0xf]
        %v1006 = vld [vmem:[#allocation5 + $0x1c] sm:$0xf]
        %v1007 = vld [vmem:[#allocation5 + $0x20] sm:$0xf]
        %v1008 = vld [vmem:[#allocation5 + $0x24] sm:$0xf]
        %v1009 = vld [vmem:[#allocation5 + $0x28] sm:$0xf]
        %v1010 = vld [vmem:[#allocation5 + $0x2c] sm:$0xf]
        %v1011 = vld [vmem:[#allocation5 + $0x30] sm:$0xf]
        %v1012 = vld [vmem:[#allocation5 + $0x34] sm:$0xf]
        %v1013 = vld [vmem:[#allocation5 + $0x38] sm:$0xf]
        %v1014 = vld [vmem:[#allocation5 + $0x3c] sm:$0xf]
        %v1015 = vld [vmem:[%s5] sm:$0x1]
        %v1017 = vperm.slane %v1015, 0
        %v1035 = vunpack.c.l.b16 %v999
        %v1036 = vunpack.c.l.b16 %v1000
        %v1037 = vunpack.c.l.b16 %v1001
        %v1038 = vunpack.c.l.b16 %v1002
        %v1039 = vunpack.c.l.b16 %v1003
        %v1040 = vunpack.c.l.b16 %v1004
        %v1041 = vunpack.c.l.b16 %v1005
        %v1042 = vunpack.c.l.b16 %v1006
        %v1043 = vunpack.c.l.b16 %v1007
        %v1044 = vunpack.c.l.b16 %v1008
        %v1045 = vunpack.c.l.b16 %v1009
        %v1046 = vunpack.c.l.b16 %v1010
        %v1047 = vunpack.c.l.b16 %v1011
        %v1048 = vunpack.c.l.b16 %v1012
        %v1049 = vunpack.c.l.b16 %v1013
        %v1050 = vunpack.c.l.b16 %v1014
        %v1051 = vpack.c.b16 %v1036, %v1035
        %v1052 = vpack.c.b16 %v1038, %v1037
        %v1053 = vpack.c.b16 %v1040, %v1039
        %v1054 = vpack.c.b16 %v1042, %v1041
        %v1055 = vpack.c.b16 %v1044, %v1043
        %v1056 = vpack.c.b16 %v1046, %v1045
        %v1057 = vpack.c.b16 %v1048, %v1047
        %v1058 = vpack.c.b16 %v1050, %v1049
        %1067 = vmatpush.bf16.msra.mxu0 %v1058
        %1068 = vmatpush.bf16.msra.mxu0 %v1057
        %1069 = vmatpush.bf16.msra.mxu0 %v1056
        %1070 = vmatpush.bf16.msra.mxu0 %v1055
        %1071 = vmatpush.bf16.msra.mxu0 %v1054
        %1072 = vmatpush.bf16.msra.mxu0 %v1053
        %1073 = vmatpush.bf16.msra.mxu0 %v1052
        %1074 = vmatpush.bf16.msra.mxu0 %v1051
        %1075 = vmatmul.bf16.gmra.mxu0 %v998
        %v1076 = vpop.f32.mrf.mxu0
        %v1077 = vadd.f32 %v1017, %v1076
        %v1078 = vpop.f32.mrf.mxu0
        %1079 = vdwg.mxu0
        %1080 = vst [vmem:[%s291] sm:$0xff] %v1077
        %s1081 = sand.u32 %s166, 1
        %s1082 = scalar_lea.sflag [#allocation4], %s1081
        %s1083 = sand.u32 %s166, 1
        %s1084 = smul.addr %s1083, 8
        %s1085 = scalar_lea.vmem [#allocation7], %s1084
        // Predicated region
        $region53: #{cross_attention_forward.1} parent=43 // pred_check
          %p1086 = pneg %p176
        $region54: #{cross_attention_forward.1} parent=43 // pred_check_branch
          %1088 = sbr.rel (%p1086) target = $region56
        $region55: #{cross_attention_forward.1} parent=43 // pred_region
          %1090 = vsyncadd %s1082, 0
          %s1091 = smul.addr %s22, 8
          %s1092 = scalar_lea.hbm %s6, %s1091
          %s1094 = sshll.u32 %s1085, 4
          %s1095 = int_to_ptr.vmem [resolvable:$true] %s1094
          %s1096 = sshll.u32 %s1092, 4
          %s1097 = int_to_ptr.hbm [resolvable:$true] %s1096
          %1099 = dma.vmem_to_hbm [thread:$0]  %s1095, 128, %s1097, %s1082
        $region56: #{cross_attention_forward.1} parent=43 // pred_fallthru
          _
      $region44: #{cross_attention_forward.1} parent=5 // pred_fallthru
        _
      %p1100 = scmp.le.s32.totalorder 2, %s17
      // Predicated region
      $region57: #{cross_attention_forward.1} parent=5 // pred_check
        %p1101 = pneg %p1100
      $region58: #{cross_attention_forward.1} parent=5 // pred_check_branch
        %1103 = sbr.rel (%p1101) target = $region60
      $region59: #{cross_attention_forward.1} parent=5 // pred_region
        %s1104 = ssub.s32 %s17, 2
        // Predicated region
        $region61: #{cross_attention_forward.1} parent=59 // pred_check
          %p1105 = pneg %p182
        $region62: #{cross_attention_forward.1} parent=59 // pred_check_branch
          %1107 = sbr.rel (%p1105) target = $region64
        $region63: #{cross_attention_forward.1} parent=59 // pred_region
          %s1108 = sand.u32 %s167, 1
          %s1109 = scalar_lea.sflag [#allocation4], %s1108
          %s1110 = sand.u32 %s167, 1
          %s1111 = smul.addr %s1110, 8
          %s1112 = scalar_lea.vmem [#allocation7], %s1111
          %1114 = dma.done %s1109, 128
        $region64: #{cross_attention_forward.1} parent=59 // pred_fallthru
          _
      $region60: #{cross_attention_forward.1} parent=5 // pred_fallthru
        _
    $region6: #{cross_attention_forward.1} parent=1 // loop_footer
      %s21 = sadd.s32 1, %s17
    $region7: #{cross_attention_forward.1} parent=1 // loop_footer_branch
      %16 = sbr.rel target = $region3
    $region8: #{cross_attention_forward.1} parent=1 // loop_exit
      _
    %1115 = vsyncpa [#allocation3], 1
    %s1116 = scalar_lea.sflag [#allocation3], 1
    %1117 = vsyncpa %s1116, 1
    %1118 = vsyncpa [#allocation6], 1
    %1119 = vsyncpa [#allocation4], 1
    %s1120 = scalar_lea.sflag [#allocation4], 1
    %1121 = vsyncpa %s1120, 1

</llo_original>
